<compile_context>
chip_gen: v5e
topology: v5e:2x2
jax: 0.10.0
libtpu: 0.0.40
codegen_flags: <defaults>
</compile_context>

<pallas_src>
import functools

import jax
import jax.numpy as jnp
from jax.experimental import pallas as pl
from jax.experimental.pallas import tpu as pltpu

_LANE = 128


def _round_up(n, m):
    return ((n + m - 1) // m) * m


def _classifier_kernel(x_ref, w1_ref, b1_ref, w2_ref, b2_ref, w3_ref, b3_ref,
                       out_ref, *, c):
    """One (D_in, TB) column-block of the Classifier forward pass.

    Batch-in-lanes layout: features on the sublane axis, batch on the lane
    axis. Weights are (out, in); biases are (out, 1) and broadcast over lanes.
    Accumulation and the whole epilogue are f32.
    """
    x = x_ref[...]

    # Hidden layer 1: W1 @ X + b1, ReLU  -> (H1, TB)
    h = jnp.dot(w1_ref[...], x, preferred_element_type=jnp.float32) + b1_ref[...]
    h = jnp.maximum(h, 0.0)

    # Hidden layer 2: W2 @ h + b2, ReLU  -> (H2, TB)
    h = jnp.dot(w2_ref[...], h.astype(w2_ref.dtype),
                preferred_element_type=jnp.float32) + b2_ref[...]
    h = jnp.maximum(h, 0.0)

    # Output layer: (1, H2) @ (H2, TB) -> lane-dense (1, TB) row.
    y = jnp.dot(w3_ref[...], h.astype(w3_ref.dtype),
                preferred_element_type=jnp.float32) + b3_ref[...]

    # ConstraintActivation (c is a static Python float -> branch at trace time).
    if c > 0:
        nn_out = jnp.maximum(y, 0.0) - 1.0 / c + 1e-06
    else:
        nn_out = -jnp.maximum(y, 0.0) - 1.0 / c - 1e-06

    # Decision function g(x, c) = 1 / (1 + (1 + c * NN_out)).
    g = 1.0 / (1.0 + (1.0 + c * nn_out))
    out_ref[...] = g.astype(out_ref.dtype)


def classifier_forward(x, params, c, *, block_cols=2048,
                       compute_dtype=jnp.float32):
    """Run the Classifier forward pass as a batched Pallas TPU kernel.

    x:      (B, D_in) float32 array, or a single (D_in,) feature vector.
    params: dict in PyTorch-style (in, out) layout:
            w1 (D_in,H1), b1 (1,H1), w2 (H1,H2), b2 (1,H2), w3 (H2,1), b3 (1,1)
    c:      static Python float (training parameter c^(tr)); must be nonzero.
    block_cols:    batch-tile width (lane axis), multiple of 128.
    compute_dtype: dtype of the matmul operands (f32 or bf16); accumulation
                   and the activation/decision epilogue are always f32.
    """
    c = float(c)
    squeeze = False
    if x.ndim == 1:
        x = x[None, :]
        squeeze = True

    B, d_in = x.shape
    h1 = params["w1"].shape[1]
    h2 = params["w2"].shape[1]
    d_out = params["w3"].shape[1]

    # Layout plumbing (wrapper-side): batch-in-lanes.
    xt = x.T.astype(compute_dtype)                      # (D_in, B)
    w1 = params["w1"].T.astype(compute_dtype)           # (H1, D_in)
    w2 = params["w2"].T.astype(compute_dtype)           # (H2, H1)
    w3 = params["w3"].T.astype(compute_dtype)           # (D_out, H2)
    b1 = params["b1"].T.astype(jnp.float32)             # (H1, 1)
    b2 = params["b2"].T.astype(jnp.float32)             # (H2, 1)
    b3 = params["b3"].T.astype(jnp.float32)             # (D_out, 1)

    # Tile the batch (lane) axis; pad so every block is full and 128-aligned.
    tb = min(int(block_cols), _round_up(B, _LANE))
    padded_b = _round_up(B, tb)
    if padded_b != B:
        xt = jnp.pad(xt, ((0, 0), (0, padded_b - B)))
    n_blocks = padded_b // tb

    itemsize = jnp.dtype(compute_dtype).itemsize
    flops = 2 * B * (d_in * h1 + h1 * h2 + h2 * d_out)
    bytes_accessed = (padded_b * d_in * itemsize          # x stream
                      + padded_b * d_out * 4              # output
                      + (w1.size + w2.size + w3.size) * itemsize
                      + (b1.size + b2.size + b3.size) * 4)

    def const_spec(a):
        # Full-array block with a constant index_map -> stays resident in VMEM.
        return pl.BlockSpec(a.shape, lambda i: (0,) * a.ndim)

    kernel = functools.partial(_classifier_kernel, c=c)
    out_t = pl.pallas_call(
        kernel,
        out_shape=jax.ShapeDtypeStruct((d_out, padded_b), jnp.float32),
        grid_spec=pltpu.PrefetchScalarGridSpec(
            num_scalar_prefetch=0,
            grid=(n_blocks,),
            in_specs=[
                pl.BlockSpec((d_in, tb), lambda i: (0, i)),   # x tile over batch
                const_spec(w1), const_spec(b1),
                const_spec(w2), const_spec(b2),
                const_spec(w3), const_spec(b3),
            ],
            out_specs=pl.BlockSpec((d_out, tb), lambda i: (0, i)),
        ),
        compiler_params=pltpu.CompilerParams(
            dimension_semantics=("parallel",),       # megacore on v7x; no-op elsewhere
            vmem_limit_bytes=32 * 1024 * 1024,       # per-step footprint is a few 100 KiB
        ),
        cost_estimate=pl.CostEstimate(
            flops=flops, transcendentals=0, bytes_accessed=bytes_accessed),
    )(xt, w1, b1, w2, b2, w3, b3)

    g = out_t[:, :B].T                                  # (B, D_out), f32
    if squeeze:
        g = g[0]
    return g


def init_params(key, architecture):
    """Deterministic parameter init matching the MLP layer shapes.

    architecture = [D_in, H1, H2, D_out]; weights stored (in, out).
    """
    keys = jax.random.split(key, 2 * (len(architecture) - 1))
    params = {}
    for i in range(len(architecture) - 1):
        fan_in, fan_out = architecture[i], architecture[i + 1]
        bound = 1.0 / jnp.sqrt(fan_in)
        w = jax.random.uniform(keys[2 * i], (fan_in, fan_out),
                               minval=-bound, maxval=bound, dtype=jnp.float32)
        b = jax.random.uniform(keys[2 * i + 1], (1, fan_out),
                               minval=-bound, maxval=bound, dtype=jnp.float32)
        params[f"w{i + 1}"] = w
        params[f"b{i + 1}"] = b
    return params


def classifier_reference(x, params, c):
    """Pure-JAX reference for correctness checking."""
    h = jnp.maximum(x @ params["w1"] + params["b1"], 0.0)
    h = jnp.maximum(h @ params["w2"] + params["b2"], 0.0)
    y = h @ params["w3"] + params["b3"]
    if c > 0:
        nn_out = jnp.maximum(y, 0.0) - 1.0 / c + 1e-06
    else:
        nn_out = -jnp.maximum(y, 0.0) - 1.0 / c - 1e-06
    return 1.0 / (1.0 + (1.0 + c * nn_out))


if __name__ == "__main__":
    # Small shapes consistent with the module: flat feature-vector input.
    architecture = [16, 32, 32, 1]   # D_in, hidden, hidden, D_out
    c = 1.5
    batch = 8

    key = jax.random.PRNGKey(0)
    k_x, k_p = jax.random.split(key)
    x = jax.random.normal(k_x, (batch, architecture[0]), dtype=jnp.float32)
    params = init_params(k_p, architecture)

    g_ref = classifier_reference(x, params, c)

    # f32 path: must match the pure-JAX reference tightly.
    g = jax.block_until_ready(classifier_forward(x, params, c))
    assert g.shape == (batch, 1)
    assert jnp.allclose(g, g_ref, atol=1e-5, rtol=1e-5), (g, g_ref)

    # bf16 matmul-operand path (HBM-traffic win on v6e/v7x): looser tolerance.
    g_bf16 = jax.block_until_ready(
        classifier_forward(x, params, c, compute_dtype=jnp.bfloat16))
    assert jnp.allclose(g_bf16, g_ref, atol=5e-2, rtol=5e-2), (g_bf16, g_ref)

    # c <= 0 branch of the constraint activation.
    g_neg = jax.block_until_ready(classifier_forward(x, params, -0.7))
    assert jnp.allclose(g_neg, classifier_reference(x, params, -0.7),
                        atol=1e-5, rtol=1e-5)

    # Multi-block grid + batch padding path (batch not a multiple of 128).
    x_big = jax.random.normal(jax.random.PRNGKey(1), (300, architecture[0]),
                              dtype=jnp.float32)
    g_big = jax.block_until_ready(
        classifier_forward(x_big, params, c, block_cols=128))
    assert g_big.shape == (300, 1)
    assert jnp.allclose(g_big, classifier_reference(x_big, params, c),
                        atol=1e-5, rtol=1e-5)

    print("KERNEL_OK")
</pallas_src>

<mosaic_0001>
module attributes {stable_mosaic.version = 11 : i64} {
  func.func @_classifier_kernel(%arg0: i32, %arg1: memref<16x128xf32, #tpu.memory_space<vmem>>, %arg2: memref<32x16xf32, #tpu.memory_space<vmem>>, %arg3: memref<32x1xf32, #tpu.memory_space<vmem>>, %arg4: memref<32x32xf32, #tpu.memory_space<vmem>>, %arg5: memref<32x1xf32, #tpu.memory_space<vmem>>, %arg6: memref<1x32xf32, #tpu.memory_space<vmem>>, %arg7: memref<1x1xf32, #tpu.memory_space<vmem>>, %arg8: memref<1x128xf32, #tpu.memory_space<vmem>>) attributes {dimension_semantics = [#tpu.dimension_semantics<parallel>], iteration_bounds = array<i64: 1>, scalar_prefetch = 0 : i64, scratch_operands = 0 : i64, tpu.core_type = #tpu.core_type<tc>, window_params = [{transform_indices = @transform_0, window_bounds = array<i64: 16, 128>}, {pipeline_mode = #tpu.pipeline_mode<synchronous>, transform_indices = @transform_1, window_bounds = array<i64: 32, 16>}, {pipeline_mode = #tpu.pipeline_mode<synchronous>, transform_indices = @transform_2, window_bounds = array<i64: 32, 1>}, {pipeline_mode = #tpu.pipeline_mode<synchronous>, transform_indices = @transform_3, window_bounds = array<i64: 32, 32>}, {pipeline_mode = #tpu.pipeline_mode<synchronous>, transform_indices = @transform_4, window_bounds = array<i64: 32, 1>}, {pipeline_mode = #tpu.pipeline_mode<synchronous>, transform_indices = @transform_5, window_bounds = array<i64: 1, 32>}, {pipeline_mode = #tpu.pipeline_mode<synchronous>, transform_indices = @transform_6, window_bounds = array<i64: 1, 1>}, {transform_indices = @transform_7, window_bounds = array<i64: 1, 128>}]} {
    %c0 = arith.constant 0 : index
    %c0_0 = arith.constant 0 : index
    %0 = vector.load %arg1[%c0, %c0_0] : memref<16x128xf32, #tpu.memory_space<vmem>>, vector<16x128xf32>
    %c0_1 = arith.constant 0 : index
    %c0_2 = arith.constant 0 : index
    %1 = vector.load %arg2[%c0_1, %c0_2] : memref<32x16xf32, #tpu.memory_space<vmem>>, vector<32x16xf32>
    %cst = arith.constant dense<0.000000e+00> : vector<32x128xf32>
    %2 = tpu.matmul %1, %0, %cst {dimension_numbers = #tpu.dot_dimension_numbers<[1], [0], [0], [1], [0, 0, 1, 1], [], []>} : vector<32x16xf32>, vector<16x128xf32>, vector<32x128xf32> -> vector<32x128xf32>
    %c0_3 = arith.constant 0 : index
    %c0_4 = arith.constant 0 : index
    %3 = vector.load %arg3[%c0_3, %c0_4] : memref<32x1xf32, #tpu.memory_space<vmem>>, vector<32x1xf32>
    %4 = vector.broadcast %3 : vector<32x1xf32> to vector<32x128xf32>
    %5 = arith.addf %2, %4 : vector<32x128xf32>
    %cst_5 = arith.constant 0.000000e+00 : f32
    %6 = vector.broadcast %cst_5 : f32 to vector<32x128xf32>
    %7 = arith.maximumf %5, %6 : vector<32x128xf32>
    %c0_6 = arith.constant 0 : index
    %c0_7 = arith.constant 0 : index
    %8 = vector.load %arg4[%c0_6, %c0_7] : memref<32x32xf32, #tpu.memory_space<vmem>>, vector<32x32xf32>
    %cst_8 = arith.constant dense<0.000000e+00> : vector<32x128xf32>
    %9 = tpu.matmul %8, %7, %cst_8 {dimension_numbers = #tpu.dot_dimension_numbers<[1], [0], [0], [1], [0, 0, 1, 1], [], []>} : vector<32x32xf32>, vector<32x128xf32>, vector<32x128xf32> -> vector<32x128xf32>
    %c0_9 = arith.constant 0 : index
    %c0_10 = arith.constant 0 : index
    %10 = vector.load %arg5[%c0_9, %c0_10] : memref<32x1xf32, #tpu.memory_space<vmem>>, vector<32x1xf32>
    %11 = vector.broadcast %10 : vector<32x1xf32> to vector<32x128xf32>
    %12 = arith.addf %9, %11 : vector<32x128xf32>
    %cst_11 = arith.constant 0.000000e+00 : f32
    %13 = vector.broadcast %cst_11 : f32 to vector<32x128xf32>
    %14 = arith.maximumf %12, %13 : vector<32x128xf32>
    %c0_12 = arith.constant 0 : index
    %c0_13 = arith.constant 0 : index
    %15 = vector.load %arg6[%c0_12, %c0_13] : memref<1x32xf32, #tpu.memory_space<vmem>>, vector<1x32xf32>
    %cst_14 = arith.constant dense<0.000000e+00> : vector<1x128xf32>
    %16 = tpu.matmul %15, %14, %cst_14 {dimension_numbers = #tpu.dot_dimension_numbers<[1], [0], [0], [1], [0, 0, 1, 1], [], []>} : vector<1x32xf32>, vector<32x128xf32>, vector<1x128xf32> -> vector<1x128xf32>
    %c0_15 = arith.constant 0 : index
    %c0_16 = arith.constant 0 : index
    %17 = vector.load %arg7[%c0_15, %c0_16] : memref<1x1xf32, #tpu.memory_space<vmem>>, vector<1x1xf32>
    %18 = vector.broadcast %17 : vector<1x1xf32> to vector<1x128xf32>
    %19 = arith.addf %16, %18 : vector<1x128xf32>
    %cst_17 = arith.constant 0.000000e+00 : f32
    %20 = vector.broadcast %cst_17 : f32 to vector<1x128xf32>
    %21 = arith.maximumf %19, %20 : vector<1x128xf32>
    %cst_18 = arith.constant 0.666666686 : f32
    %22 = vector.broadcast %cst_18 : f32 to vector<1x128xf32>
    %23 = arith.subf %21, %22 : vector<1x128xf32>
    %cst_19 = arith.constant 9.99999997E-7 : f32
    %24 = vector.broadcast %cst_19 : f32 to vector<1x128xf32>
    %25 = arith.addf %23, %24 : vector<1x128xf32>
    %cst_20 = arith.constant 1.500000e+00 : f32
    %26 = vector.broadcast %cst_20 : f32 to vector<1x128xf32>
    %27 = arith.mulf %26, %25 : vector<1x128xf32>
    %cst_21 = arith.constant 1.000000e+00 : f32
    %28 = vector.broadcast %cst_21 : f32 to vector<1x128xf32>
    %29 = arith.addf %28, %27 : vector<1x128xf32>
    %cst_22 = arith.constant 1.000000e+00 : f32
    %30 = vector.broadcast %cst_22 : f32 to vector<1x128xf32>
    %31 = arith.addf %30, %29 : vector<1x128xf32>
    %cst_23 = arith.constant 1.000000e+00 : f32
    %32 = vector.broadcast %cst_23 : f32 to vector<1x128xf32>
    %33 = arith.divf %32, %31 : vector<1x128xf32>
    %c0_24 = arith.constant 0 : index
    %c0_25 = arith.constant 0 : index
    %34 = vector.load %arg8[%c0_24, %c0_25] : memref<1x128xf32, #tpu.memory_space<vmem>>, vector<1x128xf32>
    tpu.vector_store %arg8[%c0_24, %c0_25], %33 {strides = array<i32>} : memref<1x128xf32, #tpu.memory_space<vmem>>, vector<1x128xf32>,
    return
  }
  func.func @transform_0(%arg0: i32) -> (i32, i32) {
    %c0_i32 = arith.constant 0 : i32
    %c0_i32_0 = arith.constant 0 : i32
    return %c0_i32, %arg0 : i32, i32
  }
  func.func @transform_1(%arg0: i32) -> (i32, i32) {
    %c0_i32 = arith.constant 0 : i32
    %c0_i32_0 = arith.constant 0 : i32
    %c0_i32_1 = arith.constant 0 : i32
    return %c0_i32, %c0_i32_0 : i32, i32
  }
  func.func @transform_2(%arg0: i32) -> (i32, i32) {
    %c0_i32 = arith.constant 0 : i32
    %c0_i32_0 = arith.constant 0 : i32
    %c0_i32_1 = arith.constant 0 : i32
    return %c0_i32, %c0_i32_0 : i32, i32
  }
  func.func @transform_3(%arg0: i32) -> (i32, i32) {
    %c0_i32 = arith.constant 0 : i32
    %c0_i32_0 = arith.constant 0 : i32
    %c0_i32_1 = arith.constant 0 : i32
    return %c0_i32, %c0_i32_0 : i32, i32
  }
  func.func @transform_4(%arg0: i32) -> (i32, i32) {
    %c0_i32 = arith.constant 0 : i32
    %c0_i32_0 = arith.constant 0 : i32
    %c0_i32_1 = arith.constant 0 : i32
    return %c0_i32, %c0_i32_0 : i32, i32
  }
  func.func @transform_5(%arg0: i32) -> (i32, i32) {
    %c0_i32 = arith.constant 0 : i32
    %c0_i32_0 = arith.constant 0 : i32
    %c0_i32_1 = arith.constant 0 : i32
    return %c0_i32, %c0_i32_0 : i32, i32
  }
  func.func @transform_6(%arg0: i32) -> (i32, i32) {
    %c0_i32 = arith.constant 0 : i32
    %c0_i32_0 = arith.constant 0 : i32
    %c0_i32_1 = arith.constant 0 : i32
    return %c0_i32, %c0_i32_0 : i32, i32
  }
  func.func @transform_7(%arg0: i32) -> (i32, i32) {
    %c0_i32 = arith.constant 0 : i32
    %c0_i32_0 = arith.constant 0 : i32
    return %c0_i32, %arg0 : i32, i32
  }
}

</mosaic_0001>

<llo_original>
// kernel: tpu_custom_call.1
$region0: #{tpu_custom_call.1}
  #allocation0 [shape = 'u32[]', space=smem, size = 0x4, offset = 0x4, fixed_abs, tag = 'smem constant byte address 0x4 - core index']
  #allocation1 [shape = 'u32[72,128]{1,0:T(1,128)}', space=vmem, size = 0x9000, scoped, tag = 'internal scratch']
  #allocation2 [shape = 'f32[1,1]{1,0:T(1,128)S(1)}', space=vmem, size = 0x200, scoped, tag = 'scoped memory for tpu_custom_call.1']
  %s0 = inlined_call_operand.vmem [shape: f32[16,128], index: 0, kind: input, shape index: {}]
  %s1 = inlined_call_operand.vmem [shape: f32[32,16], index: 1, kind: input, shape index: {}]
  %s2 = inlined_call_operand.vmem [shape: f32[32,1], index: 2, kind: input, shape index: {}]
  %s3 = inlined_call_operand.vmem [shape: f32[32,32], index: 3, kind: input, shape index: {}]
  %s4 = inlined_call_operand.vmem [shape: f32[32,1], index: 4, kind: input, shape index: {}]
  %s5 = inlined_call_operand.vmem [shape: f32[1,32], index: 5, kind: input, shape index: {}]
  %s6 = inlined_call_operand.<no memory space> [shape: f32[1,1], index: 6, kind: input, shape index: {}]
  %s7 = inlined_call_operand.hbm [shape: f32[1,128], index: 7, kind: output, shape index: {}]
  %s8 = sld [smem:[#allocation0]]
  $region38: #{tpu_custom_call.1} parent=0
    _
  %s10 = ssub.s32 1, %s8
  %s11 = scalar_select 0, %s10, %s8
  %v12 = vstv %s6
  %13 = vst [vmem:[#allocation2] sm:$0x1] %v12
  $region1: #{tpu_custom_call.1} parent=0
    #allocation3 [shape = 'u8[512]{0}', space=vmem, size = 0x400, scoped, tag = 'output window, operand 0, single buffered']
    #allocation4 [shape = 's32[1]{0}', space=sflag, size = 0x4, scoped, tag = 'scoped memory for tpu_custom_call.1']
    %14 = vsyncpa [#allocation4], 0
    // Predicated region
    $region2: #{tpu_custom_call.1} parent=1 // pred_check
      _
    $region3: #{tpu_custom_call.1} parent=1 // pred_check_branch
      %16 = sbr.rel (0) target = $region5
    $region4: #{tpu_custom_call.1} parent=1 // pred_region
      _
    $region5: #{tpu_custom_call.1} parent=1 // pred_fallthru
      _
    // Predicated region
    $region6: #{tpu_custom_call.1} parent=1 // pred_check
      _
    $region7: #{tpu_custom_call.1} parent=1 // pred_check_branch
      %18 = sbr.rel (0) target = $region9
    $region8: #{tpu_custom_call.1} parent=1 // pred_region
      _
    $region9: #{tpu_custom_call.1} parent=1 // pred_fallthru
      _
    // Predicated region
    $region10: #{tpu_custom_call.1} parent=1 // pred_check
      _
    $region11: #{tpu_custom_call.1} parent=1 // pred_check_branch
      %20 = sbr.rel (0) target = $region13
    $region12: #{tpu_custom_call.1} parent=1 // pred_region
      _
    $region13: #{tpu_custom_call.1} parent=1 // pred_fallthru
      _
    // Predicated region
    $region14: #{tpu_custom_call.1} parent=1 // pred_check
      _
    $region15: #{tpu_custom_call.1} parent=1 // pred_check_branch
      %22 = sbr.rel (0) target = $region17
    $region16: #{tpu_custom_call.1} parent=1 // pred_region
      _
    $region17: #{tpu_custom_call.1} parent=1 // pred_fallthru
      _
    // Predicated region
    $region18: #{tpu_custom_call.1} parent=1 // pred_check
      _
    $region19: #{tpu_custom_call.1} parent=1 // pred_check_branch
      %24 = sbr.rel (0) target = $region21
    $region20: #{tpu_custom_call.1} parent=1 // pred_region
      _
    $region21: #{tpu_custom_call.1} parent=1 // pred_fallthru
      _
    // Predicated region
    $region22: #{tpu_custom_call.1} parent=1 // pred_check
      _
    $region23: #{tpu_custom_call.1} parent=1 // pred_check_branch
      %26 = sbr.rel (0) target = $region25
    $region24: #{tpu_custom_call.1} parent=1 // pred_region
      _
    $region25: #{tpu_custom_call.1} parent=1 // pred_fallthru
      _
    // Predicated region
    $region26: #{tpu_custom_call.1} parent=1 // pred_check
      _
    $region27: #{tpu_custom_call.1} parent=1 // pred_check_branch
      %28 = sbr.rel (0) target = $region29
    $region28: #{tpu_custom_call.1} parent=1 // pred_region
      _
    $region29: #{tpu_custom_call.1} parent=1 // pred_fallthru
      _
    %v29 = vld [vmem:[%s0] sm:$0xff]
    %v30 = vld [vmem:[%s0 + $0x8] sm:$0xff]
    %v31 = vld [vmem:[%s1] sm:$0xff]
    %v32 = vld [vmem:[%s1 + $0x8] sm:$0xff]
    %v33 = vld [vmem:[%s1 + $0x10] sm:$0xff]
    %v34 = vld [vmem:[%s1 + $0x18] sm:$0xff]
    %v35 = vld [vmem:[%s2] sm:$0xff]
    %v36 = vld [vmem:[%s2 + $0x8] sm:$0xff]
    %v37 = vld [vmem:[%s2 + $0x10] sm:$0xff]
    %v38 = vld [vmem:[%s2 + $0x18] sm:$0xff]
    %40 = vset.pattern.permute.xlu0 0
    %41 = vperm.xlu0 %40, %v35
    %v42 = vpop.permute.xlu0 %41
    %45 = vset.pattern.permute.xlu0 0
    %46 = vperm.xlu0 %45, %v36
    %v47 = vpop.permute.xlu0 %46
    %50 = vset.pattern.permute.xlu0 0
    %51 = vperm.xlu0 %50, %v37
    %v52 = vpop.permute.xlu0 %51
    %55 = vset.pattern.permute.xlu0 0
    %56 = vperm.xlu0 %55, %v38
    %v57 = vpop.permute.xlu0 %56
    %vm59 = vcmask 130048
    %v61 = vsel %vm59, %v31, 0
    %v64 = vsel %vm59, %v32, 0
    %v67 = vsel %vm59, %v33, 0
    %v70 = vsel %vm59, %v34, 0
    %72 = vmatpush.msra.mxu0 0.0
    %73 = vmatpush.msra.mxu0 0.0
    %74 = vmatpush.msra.mxu0 0.0
    %75 = vmatpush.msra.mxu0 0.0
    %76 = vmatpush.msra.mxu0 0.0
    %77 = vmatpush.msra.mxu0 0.0
    %78 = vmatpush.msra.mxu0 0.0
    %79 = vmatpush.msra.mxu0 0.0
    %80 = vmatpush.msra.mxu0 0.0
    %81 = vmatpush.msra.mxu0 0.0
    %82 = vmatpush.msra.mxu0 0.0
    %83 = vmatpush.msra.mxu0 0.0
    %84 = vmatpush.msra.mxu0 0.0
    %85 = vmatpush.msra.mxu0 0.0
    %86 = vmatpush.msra.mxu0 %v30
    %87 = vmatpush.msra.mxu0 %v29
    %88 = vmatmul.f32.gmra.mxu0 %v61
    %v89 = vpop.f32.mrf.mxu0
    %v90 = vadd.f32 %v42, %v89
    %91 = vmatmul.f32.gmra.mxu0 %v64
    %v92 = vpop.f32.mrf.mxu0
    %v93 = vadd.f32 %v47, %v92
    %94 = vmatmul.f32.gmra.mxu0 %v67
    %v95 = vpop.f32.mrf.mxu0
    %v96 = vadd.f32 %v52, %v95
    %97 = vmatmul.f32.gmra.mxu0 %v70
    %v98 = vpop.f32.mrf.mxu0
    %v99 = vadd.f32 %v57, %v98
    %100 = vdwg.mxu0
    %v101 = vmax.f32 %v90, 0.0
    %v102 = vmax.f32 %v93, 0.0
    %v103 = vmax.f32 %v96, 0.0
    %v104 = vmax.f32 %v99, 0.0
    %v105 = vld [vmem:[%s3] sm:$0xff]
    %v106 = vld [vmem:[%s3 + $0x8] sm:$0xff]
    %v107 = vld [vmem:[%s3 + $0x10] sm:$0xff]
    %v108 = vld [vmem:[%s3 + $0x18] sm:$0xff]
    %v109 = vld [vmem:[%s4] sm:$0xff]
    %v110 = vld [vmem:[%s4 + $0x8] sm:$0xff]
    %v111 = vld [vmem:[%s4 + $0x10] sm:$0xff]
    %v112 = vld [vmem:[%s4 + $0x18] sm:$0xff]
    %114 = vset.pattern.permute.xlu0 0
    %115 = vperm.xlu0 %114, %v109
    %v116 = vpop.permute.xlu0 %115
    %119 = vset.pattern.permute.xlu0 0
    %120 = vperm.xlu0 %119, %v110
    %v121 = vpop.permute.xlu0 %120
    %124 = vset.pattern.permute.xlu0 0
    %125 = vperm.xlu0 %124, %v111
    %v126 = vpop.permute.xlu0 %125
    %129 = vset.pattern.permute.xlu0 0
    %130 = vperm.xlu0 %129, %v112
    %v131 = vpop.permute.xlu0 %130
    %vm133 = vcmask 261120
    %v135 = vsel %vm133, %v105, 0
    %v138 = vsel %vm133, %v106, 0
    %v141 = vsel %vm133, %v107, 0
    %v144 = vsel %vm133, %v108, 0
    %146 = vmatpush.msra.mxu0 0.0
    %147 = vmatpush.msra.mxu0 0.0
    %148 = vmatpush.msra.mxu0 0.0
    %149 = vmatpush.msra.mxu0 0.0
    %150 = vmatpush.msra.mxu0 0.0
    %151 = vmatpush.msra.mxu0 0.0
    %152 = vmatpush.msra.mxu0 0.0
    %153 = vmatpush.msra.mxu0 0.0
    %154 = vmatpush.msra.mxu0 0.0
    %155 = vmatpush.msra.mxu0 0.0
    %156 = vmatpush.msra.mxu0 0.0
    %157 = vmatpush.msra.mxu0 0.0
    %158 = vmatpush.msra.mxu0 %v104
    %159 = vmatpush.msra.mxu0 %v103
    %160 = vmatpush.msra.mxu0 %v102
    %161 = vmatpush.msra.mxu0 %v101
    %162 = vmatmul.f32.gmra.mxu0 %v135
    %v163 = vpop.f32.mrf.mxu0
    %v164 = vadd.f32 %v116, %v163
    %165 = vmatmul.f32.gmra.mxu0 %v138
    %v166 = vpop.f32.mrf.mxu0
    %v167 = vadd.f32 %v121, %v166
    %168 = vmatmul.f32.gmra.mxu0 %v141
    %v169 = vpop.f32.mrf.mxu0
    %v170 = vadd.f32 %v126, %v169
    %171 = vmatmul.f32.gmra.mxu0 %v144
    %v172 = vpop.f32.mrf.mxu0
    %v173 = vadd.f32 %v131, %v172
    %174 = vdwg.mxu0
    %v175 = vmax.f32 %v164, 0.0
    %v176 = vmax.f32 %v167, 0.0
    %v177 = vmax.f32 %v170, 0.0
    %v178 = vmax.f32 %v173, 0.0
    %v179 = vld [vmem:[%s5] sm:$0x1]
    %v180 = vld [vmem:[#allocation2] sm:$0x1]
    %182 = vset.pattern.permute.xlu0 0
    %183 = vperm.xlu0 %182, %v180
    %v184 = vpop.permute.xlu0 %183
    %v186 = vperm.slane %v184, 0
    %v188 = vsel %vm133, %v179, 0
    %190 = vmatpush.msra.mxu0 0.0
    %191 = vmatpush.msra.mxu0 0.0
    %192 = vmatpush.msra.mxu0 0.0
    %193 = vmatpush.msra.mxu0 0.0
    %194 = vmatpush.msra.mxu0 0.0
    %195 = vmatpush.msra.mxu0 0.0
    %196 = vmatpush.msra.mxu0 0.0
    %197 = vmatpush.msra.mxu0 0.0
    %198 = vmatpush.msra.mxu0 0.0
    %199 = vmatpush.msra.mxu0 0.0
    %200 = vmatpush.msra.mxu0 0.0
    %201 = vmatpush.msra.mxu0 0.0
    %202 = vmatpush.msra.mxu0 %v178
    %203 = vmatpush.msra.mxu0 %v177
    %204 = vmatpush.msra.mxu0 %v176
    %205 = vmatpush.msra.mxu0 %v175
    %206 = vmatmul.f32.gmra.mxu0 %v188
    %v207 = vpop.f32.mrf.mxu0
    %v208 = vadd.f32 %v186, %v207
    %209 = vdwg.mxu0
    %v210 = vmax.f32 %v208, 0.0
    %v211 = vsub.f32 %v210, 0.6666667
    %v212 = vadd.f32 %v211, 1e-06
    %v213 = vmul.f32 %v212, 1.5
    %v214 = vadd.f32 %v213, 1.0
    %v215 = vadd.f32 %v214, 1.0
    %v216 = vrcp.pop %v215
    %v217 = vmul.f32 %v215, %v216
    %v218 = vsub.f32 1.0, %v217
    %v219 = vmul.f32 %v216, %v218
    %v220 = vadd.f32 %v216, %v219
    %vm221 = vweird.f32 %v215
    %vm222 = vweird.f32 %v216
    %vm223 = vmor %vm221, %vm222
    %v224 = vsel %vm223, %v216, %v220
    %v225 = vand.u32 2147483647, %v215
    %vm226 = vcmp.eq.f32.partialorder %v225, 8.507059e+37
    %v227 = vand.u32 %v215, 2147483648
    %v228 = vor.u32 1.1754944e-38, %v227
    %v229 = vsel %vm226, %v228, %v224
    %v230 = vmul.f32 1.0, %v229
    %231 = vst [vmem:[#allocation3] sm:$0x1] %v230
    // Predicated region
    $region30: #{tpu_custom_call.1} parent=1 // pred_check
      _
    $region31: #{tpu_custom_call.1} parent=1 // pred_check_branch
      %233 = sbr.rel (0) target = $region33
    $region32: #{tpu_custom_call.1} parent=1 // pred_region
      %235 = vsyncadd [#allocation4], 0
      %s237 = sshll.u32 [#allocation3], 4
      %s238 = int_to_ptr.vmem [resolvable:$true] %s237
      %s239 = sshll.u32 %s7, 4
      %s240 = int_to_ptr.hbm [resolvable:$true] %s239
      %242 = dma.vmem_to_hbm [thread:$0]  %s238, 16, %s240, [#allocation4]
    $region33: #{tpu_custom_call.1} parent=1 // pred_fallthru
      _
    // Predicated region
    $region34: #{tpu_custom_call.1} parent=1 // pred_check
      _
    $region35: #{tpu_custom_call.1} parent=1 // pred_check_branch
      %244 = sbr.rel (0) target = $region37
    $region36: #{tpu_custom_call.1} parent=1 // pred_region
      %246 = dma.done [#allocation4], 16
    $region37: #{tpu_custom_call.1} parent=1 // pred_fallthru
      _
    %247 = vsyncpa [#allocation4], 1

</llo_original>
